<compile_context>
chip_gen: v7x
topology: tpu7x:2x2x1
jax: 0.10.0
libtpu: 0.0.40
codegen_flags: <defaults>
</compile_context>

<pallas_src>
import functools

import jax
import jax.numpy as jnp
from jax.experimental import pallas as pl
from jax.experimental.pallas import tpu as pltpu

_LANE = 128
_VMEM_LIMIT = 48 * 1024 * 1024  # <= v7x's 64 MiB physical VMEM; fine on v5e/v6e


def _round_up(x, m):
    return ((x + m - 1) // m) * m


def _largest_tile(n_pad, cap):
    """Largest multiple of 128 that divides n_pad and is <= cap (>=128)."""
    cap = max(cap, _LANE)
    best = _LANE
    t = _LANE
    limit = min(cap, n_pad)
    while t <= limit:
        if n_pad % t == 0:
            best = t
        t += _LANE
    return best


# ---------------------------------------------------------------------------
# Kernel 1: node-feature projection  XW = X @ W1   (bf16 in / bf16 out, f32 acc)
# ---------------------------------------------------------------------------
def _project_kernel(x_ref, w1_ref, xw_ref):
    xw_ref[...] = jnp.dot(
        x_ref[...], w1_ref[...], preferred_element_type=jnp.float32
    ).astype(xw_ref.dtype)


# ---------------------------------------------------------------------------
# Kernel 2: tiled aggregation + fused epilogue
#   acc(i) += A_hat[i, k] @ XW[k*tk : (k+1)*tk]      (f32 VMEM accumulator,
#                                                      XW is VMEM-resident)
#   z(i)    = relu(acc(i) + b1) @ W2 + b2            (on the last k step)
# ---------------------------------------------------------------------------
def _aggregate_kernel(a_ref, xw_ref, b1_ref, w2_ref, b2_ref, z_ref, acc_ref, *, tk):
    k = pl.program_id(1)

    @pl.when(k == 0)
    def _():
        acc_ref[...] = jnp.zeros_like(acc_ref)

    start = pl.multiple_of(k * tk, _LANE)
    xw_tile = xw_ref[pl.ds(start, tk), :]            # slice the resident XW
    acc_ref[...] += jnp.dot(
        a_ref[...], xw_tile, preferred_element_type=jnp.float32
    )

    @pl.when(k == pl.num_programs(1) - 1)
    def _():
        h = acc_ref[...] + b1_ref[...]                # GCN bias
        e = jnp.maximum(h, 0.0)                       # ReLU
        z = jnp.dot(e, w2_ref[...], preferred_element_type=jnp.float32) + b2_ref[...]
        z_ref[...] = z.astype(z_ref.dtype)            # lane-dense (C padded to 128)


# ---------------------------------------------------------------------------
# One-pass, padded, bf16 normalized adjacency (hoist/cache this for static graphs)
#   A_hat = D^-1/2 (A + I) D^-1/2 with A[dst, src] = 1  (PyG gcn_norm)
# ---------------------------------------------------------------------------
def build_normalized_adjacency(edge_index, num_nodes, n_pad=None, dtype=jnp.bfloat16):
    if n_pad is None:
        n_pad = _round_up(num_nodes, _LANE)
    src = edge_index[0]
    dst = edge_index[1]
    loops = jnp.arange(num_nodes, dtype=src.dtype)
    src = jnp.concatenate([src, loops])
    dst = jnp.concatenate([dst, loops])
    # in-degree (row sums of A[dst, src]) including self-loops
    deg = jnp.zeros((num_nodes,), jnp.float32).at[dst].add(1.0)
    dinv = jnp.where(deg > 0, 1.0 / jnp.sqrt(deg), 0.0)
    w = (dinv[dst] * dinv[src]).astype(dtype)
    # single scatter straight into the padded bf16 matrix (padded rows/cols = 0)
    a_hat = jnp.zeros((n_pad, n_pad), dtype).at[dst, src].add(w)
    # TODO(synk): for genuinely sparse graphs replace the dense (N,N) A_hat with
    # a CSR / scalar-prefetch (PrefetchScalarGridSpec) gather formulation.
    return a_hat


# ---------------------------------------------------------------------------
# JAX glue.  `a_hat` must be the padded bf16 matrix from
# build_normalized_adjacency (built once / cached for static graphs).
# ---------------------------------------------------------------------------
def graphmix_forward(x, a_hat, params):
    n, in_feat = x.shape
    n_pad = a_hat.shape[0]
    hidden = params["w1"].shape[1]
    c = params["w2"].shape[1]
    c_pad = _round_up(c, _LANE)

    # cheap O(N * feat) padding / casts
    x_bf = jnp.pad(x, ((0, n_pad - n), (0, 0))).astype(jnp.bfloat16)
    w1 = params["w1"].astype(jnp.bfloat16)
    b1 = params["b1"]
    w2 = jnp.pad(params["w2"], ((0, 0), (0, c_pad - c)))
    b2 = jnp.pad(params["b2"], ((0, 0), (0, c_pad - c)))

    # ---- tile selection (tiles are divisors of n_pad, multiples of 128) -----
    # tm: row tile, <=1024 and <= n_pad//2 (keep >=2 row steps for v7x megacore)
    tm = _largest_tile(n_pad, min(1024, max(n_pad // 2, _LANE)))
    # tk: reduction tile of the HBM-bound A_hat stream, up to 2048
    #     (tm=1024, tk=2048 bf16 -> 4 MiB tile, 8 MiB double-buffered)
    tk = _largest_tile(n_pad, 2048)
    # tp: projection-kernel row tile (large, so kernel 1 isn't overhead-bound)
    tp = _largest_tile(n_pad, 4096)

    # --- kernel 1: XW = X @ W1 (row-tiled, bf16 in, bf16 out) ----------------
    xw = pl.pallas_call(
        _project_kernel,
        out_shape=jax.ShapeDtypeStruct((n_pad, hidden), jnp.bfloat16),
        grid=(n_pad // tp,),
        in_specs=[
            pl.BlockSpec((tp, in_feat), lambda i: (i, 0)),
            pl.BlockSpec((in_feat, hidden), lambda i: (0, 0)),
        ],
        out_specs=pl.BlockSpec((tp, hidden), lambda i: (i, 0)),
        compiler_params=pltpu.CompilerParams(
            dimension_semantics=("parallel",),
            vmem_limit_bytes=_VMEM_LIMIT,
        ),
    )(x_bf, w1)

    # --- kernel 2: tiled A_hat @ XW reduction + fused bias/ReLU/Linear -------
    z_pad = pl.pallas_call(
        functools.partial(_aggregate_kernel, tk=tk),
        out_shape=jax.ShapeDtypeStruct((n_pad, c_pad), jnp.float32),
        grid=(n_pad // tm, n_pad // tk),
        in_specs=[
            pl.BlockSpec((tm, tk), lambda i, k: (i, k)),           # A_hat tile (bf16)
            pl.BlockSpec((n_pad, hidden), lambda i, k: (0, 0)),    # XW, VMEM-resident
            pl.BlockSpec((1, hidden), lambda i, k: (0, 0)),        # b1
            pl.BlockSpec((hidden, c_pad), lambda i, k: (0, 0)),    # W2 (padded)
            pl.BlockSpec((1, c_pad), lambda i, k: (0, 0)),         # b2 (padded)
        ],
        out_specs=pl.BlockSpec((tm, c_pad), lambda i, k: (i, 0)),
        scratch_shapes=[pltpu.VMEM((tm, hidden), jnp.float32)],
        compiler_params=pltpu.CompilerParams(
            dimension_semantics=("parallel", "arbitrary"),
            vmem_limit_bytes=_VMEM_LIMIT,
        ),
    )(a_hat, xw, b1, w2, b2)

    return z_pad[:n, :c]


def init_params(key, in_feat=64, hidden=32, num_classes=4):
    k1, k2, k3, k4 = jax.random.split(key, 4)
    # stored transposed relative to torch's (out, in) layout
    w1 = jax.random.normal(k1, (in_feat, hidden), jnp.float32) * (1.0 / jnp.sqrt(in_feat))
    b1 = jax.random.normal(k2, (1, hidden), jnp.float32) * 0.01
    w2 = jax.random.normal(k3, (hidden, num_classes), jnp.float32) * (1.0 / jnp.sqrt(hidden))
    b2 = jax.random.normal(k4, (1, num_classes), jnp.float32) * 0.01
    return {"w1": w1, "b1": b1, "w2": w2, "b2": b2}


if __name__ == "__main__":
    key = jax.random.PRNGKey(0)
    kx, kp = jax.random.split(key)

    num_nodes = 8
    in_feat = 64
    num_classes = 4

    # deterministic node features
    x = jax.random.normal(kx, (num_nodes, in_feat), jnp.float32)

    # deterministic ring graph, both directions: (2, 16)
    src = jnp.arange(num_nodes, dtype=jnp.int32)
    dst = (src + 1) % num_nodes
    edge_index = jnp.concatenate(
        [jnp.stack([src, dst], axis=0), jnp.stack([dst, src], axis=0)], axis=1
    )

    params = init_params(kp, in_feat=in_feat, hidden=32, num_classes=num_classes)

    # A_hat built once (hoisted / cacheable for static graphs)
    a_hat = build_normalized_adjacency(edge_index, num_nodes)

    z = graphmix_forward(x, a_hat, params)
    jax.block_until_ready(z)

    assert z.shape == (num_nodes, num_classes)
    assert z.dtype == jnp.float32
    print("KERNEL_OK")
</pallas_src>

<mosaic_0001>
module attributes {stable_mosaic.version = 11 : i64} {
  func.func @_project_kernel(%arg0: i32, %arg1: memref<128x64xbf16, #tpu.memory_space<vmem>>, %arg2: memref<64x32xbf16, #tpu.memory_space<vmem>>, %arg3: memref<128x32xbf16, #tpu.memory_space<vmem>>) attributes {dimension_semantics = [#tpu.dimension_semantics<parallel>], iteration_bounds = array<i64: 1>, scalar_prefetch = 0 : i64, scratch_operands = 0 : i64, tpu.core_type = #tpu.core_type<tc>, window_params = [{transform_indices = @transform_0, window_bounds = array<i64: 128, 64>}, {pipeline_mode = #tpu.pipeline_mode<synchronous>, transform_indices = @transform_1, window_bounds = array<i64: 64, 32>}, {transform_indices = @transform_2, window_bounds = array<i64: 128, 32>}]} {
    %c0 = arith.constant 0 : index
    %c0_0 = arith.constant 0 : index
    %0 = vector.load %arg1[%c0, %c0_0] : memref<128x64xbf16, #tpu.memory_space<vmem>>, vector<128x64xbf16>
    %c0_1 = arith.constant 0 : index
    %c0_2 = arith.constant 0 : index
    %1 = vector.load %arg2[%c0_1, %c0_2] : memref<64x32xbf16, #tpu.memory_space<vmem>>, vector<64x32xbf16>
    %cst = arith.constant dense<0.000000e+00> : vector<128x32xf32>
    %2 = tpu.matmul %0, %1, %cst {dimension_numbers = #tpu.dot_dimension_numbers<[1], [0], [0], [1], [0, 0, 1, 1], [], []>} : vector<128x64xbf16>, vector<64x32xbf16>, vector<128x32xf32> -> vector<128x32xf32>
    %3 = arith.truncf %2 : vector<128x32xf32> to vector<128x32xbf16>
    %c0_3 = arith.constant 0 : index
    %c0_4 = arith.constant 0 : index
    %4 = vector.load %arg3[%c0_3, %c0_4] : memref<128x32xbf16, #tpu.memory_space<vmem>>, vector<128x32xbf16>
    tpu.vector_store %arg3[%c0_3, %c0_4], %3 {strides = array<i32>} : memref<128x32xbf16, #tpu.memory_space<vmem>>, vector<128x32xbf16>,
    return
  }
  func.func @transform_0(%arg0: i32) -> (i32, i32) {
    %c0_i32 = arith.constant 0 : i32
    %c0_i32_0 = arith.constant 0 : i32
    return %arg0, %c0_i32 : i32, i32
  }
  func.func @transform_1(%arg0: i32) -> (i32, i32) {
    %c0_i32 = arith.constant 0 : i32
    %c0_i32_0 = arith.constant 0 : i32
    %c0_i32_1 = arith.constant 0 : i32
    return %c0_i32, %c0_i32_0 : i32, i32
  }
  func.func @transform_2(%arg0: i32) -> (i32, i32) {
    %c0_i32 = arith.constant 0 : i32
    %c0_i32_0 = arith.constant 0 : i32
    return %arg0, %c0_i32 : i32, i32
  }
}

</mosaic_0001>

<llo_original>
// kernel: tpu_custom_call.1
$region0: #{tpu_custom_call.1}
  #allocation0 [shape = 'u32[]', space=smem, size = 0x4, offset = 0x4, fixed_abs, tag = 'smem constant byte address 0x4 - core index']
  #allocation1 [shape = 'u32[144,128]{1,0:T(1,128)}', space=vmem, size = 0x12000, scoped, tag = 'internal scratch']
  %s0 = inlined_call_operand.vmem [shape: bf16[128,64], index: 0, kind: input, shape index: {}]
  %s1 = inlined_call_operand.vmem [shape: bf16[64,32], index: 1, kind: input, shape index: {}]
  %s2 = inlined_call_operand.vmem [shape: bf16[128,32], index: 2, kind: output, shape index: {}]
  %s3 = sld [smem:[#allocation0]]
  $region18: #{tpu_custom_call.1} parent=0
    _
  %s5 = ssub.s32 1, %s3
  %s6 = scalar_select 0, %s5, %s3
  // Predicated region
  $region2: #{tpu_custom_call.1} parent=0 // pred_check
    _
  $region3: #{tpu_custom_call.1} parent=0 // pred_check_branch
    %8 = sbr.rel (0) target = $region5
  $region4: #{tpu_custom_call.1} parent=0 // pred_region
    _
  $region5: #{tpu_custom_call.1} parent=0 // pred_fallthru
    _
  // Predicated region
  $region6: #{tpu_custom_call.1} parent=0 // pred_check
    _
  $region7: #{tpu_custom_call.1} parent=0 // pred_check_branch
    %10 = sbr.rel (0) target = $region9
  $region8: #{tpu_custom_call.1} parent=0 // pred_region
    _
  $region9: #{tpu_custom_call.1} parent=0 // pred_fallthru
    _
  %v12 = vld [vmem:[%s0] sm:$0xf]
  %v13 = vld [vmem:[%s0 + $0x4] sm:$0xf]
  %v14 = vld [vmem:[%s0 + $0x8] sm:$0xf]
  %v15 = vld [vmem:[%s0 + $0xc] sm:$0xf]
  %v16 = vld [vmem:[%s0 + $0x10] sm:$0xf]
  %v17 = vld [vmem:[%s0 + $0x14] sm:$0xf]
  %v18 = vld [vmem:[%s0 + $0x18] sm:$0xf]
  %v19 = vld [vmem:[%s0 + $0x1c] sm:$0xf]
  %v20 = vld [vmem:[%s0 + $0x20] sm:$0xf]
  %v21 = vld [vmem:[%s0 + $0x24] sm:$0xf]
  %v22 = vld [vmem:[%s0 + $0x28] sm:$0xf]
  %v23 = vld [vmem:[%s0 + $0x2c] sm:$0xf]
  %v24 = vld [vmem:[%s0 + $0x30] sm:$0xf]
  %v25 = vld [vmem:[%s0 + $0x34] sm:$0xf]
  %v26 = vld [vmem:[%s0 + $0x38] sm:$0xf]
  %v27 = vld [vmem:[%s0 + $0x3c] sm:$0xf]
  %v28 = vld [vmem:[%s1] sm:$0xf]
  %v29 = vld [vmem:[%s1 + $0x4] sm:$0xf]
  %v30 = vld [vmem:[%s1 + $0x8] sm:$0xf]
  %v31 = vld [vmem:[%s1 + $0xc] sm:$0xf]
  %v32 = vld [vmem:[%s1 + $0x10] sm:$0xf]
  %v33 = vld [vmem:[%s1 + $0x14] sm:$0xf]
  %v34 = vld [vmem:[%s1 + $0x18] sm:$0xf]
  %v35 = vld [vmem:[%s1 + $0x1c] sm:$0xf]
  %v52 = vunpack.c.l.b16 %v12
  %v53 = vunpack.c.l.b16 %v13
  %v54 = vunpack.c.l.b16 %v14
  %v55 = vunpack.c.l.b16 %v15
  %v56 = vunpack.c.l.b16 %v16
  %v57 = vunpack.c.l.b16 %v17
  %v58 = vunpack.c.l.b16 %v18
  %v59 = vunpack.c.l.b16 %v19
  %v60 = vunpack.c.l.b16 %v20
  %v61 = vunpack.c.l.b16 %v21
  %v62 = vunpack.c.l.b16 %v22
  %v63 = vunpack.c.l.b16 %v23
  %v64 = vunpack.c.l.b16 %v24
  %v65 = vunpack.c.l.b16 %v25
  %v66 = vunpack.c.l.b16 %v26
  %v67 = vunpack.c.l.b16 %v27
  %v68 = vpack.c.b16 %v53, %v52
  %v69 = vpack.c.b16 %v55, %v54
  %v70 = vpack.c.b16 %v57, %v56
  %v71 = vpack.c.b16 %v59, %v58
  %v72 = vpack.c.b16 %v61, %v60
  %v73 = vpack.c.b16 %v63, %v62
  %v74 = vpack.c.b16 %v65, %v64
  %v75 = vpack.c.b16 %v67, %v66
  %v84 = vunpack.c.l.b16 %v28
  %v85 = vunpack.c.l.b16 %v29
  %v86 = vunpack.c.l.b16 %v30
  %v87 = vunpack.c.l.b16 %v31
  %v88 = vunpack.c.l.b16 %v32
  %v89 = vunpack.c.l.b16 %v33
  %v90 = vunpack.c.l.b16 %v34
  %v91 = vunpack.c.l.b16 %v35
  %v92 = vpack.c.b16 %v85, %v84
  %v93 = vpack.c.b16 %v87, %v86
  %v94 = vpack.c.b16 %v89, %v88
  %v95 = vpack.c.b16 %v91, %v90
  %vm100 = vcmask 523264
  %v102 = vsel %vm100, %v68, 0
  %v105 = vsel %vm100, %v69, 0
  %v108 = vsel %vm100, %v70, 0
  %v111 = vsel %vm100, %v71, 0
  %v114 = vsel %vm100, %v72, 0
  %v117 = vsel %vm100, %v73, 0
  %v120 = vsel %vm100, %v74, 0
  %v123 = vsel %vm100, %v75, 0
  %125 = vmatprep.subr.bf16.mxu0 0
  %126 = vmatpush1.bf16.msra.mxu0 %v92
  %127 = vmatprep.subr.bf16.mxu0 0
  %128 = vmatpush1.bf16.msra.mxu0 %v93
  %129 = vmatprep.subr.bf16.mxu0 0
  %130 = vmatpush1.bf16.msra.mxu0 %v94
  %131 = vmatprep.subr.bf16.mxu0 0
  %132 = vmatpush1.bf16.msra.mxu0 %v95
  %133 = vmatprep.subr.bf16.mxu0 0
  %134 = vmatpush1.bf16.msra.mxu0 0
  %135 = vmatprep.subr.bf16.mxu0 0
  %136 = vmatpush1.bf16.msra.mxu0 0
  %137 = vmatprep.subr.bf16.mxu0 0
  %138 = vmatpush1.bf16.msra.mxu0 0
  %139 = vmatprep.subr.bf16.mxu0 0
  %140 = vmatpush1.bf16.msra.mxu0 0
  %141 = vmatprep.subr.bf16.mxu0 0
  %142 = vmatpush1.bf16.msra.mxu0 0
  %143 = vmatprep.subr.bf16.mxu0 0
  %144 = vmatpush1.bf16.msra.mxu0 0
  %145 = vmatprep.subr.bf16.mxu0 0
  %146 = vmatpush1.bf16.msra.mxu0 0
  %147 = vmatprep.subr.bf16.mxu0 0
  %148 = vmatpush1.bf16.msra.mxu0 0
  %149 = vmatprep.subr.bf16.mxu0 0
  %150 = vmatpush1.bf16.msra.mxu0 0
  %151 = vmatprep.subr.bf16.mxu0 0
  %152 = vmatpush1.bf16.msra.mxu0 0
  %153 = vmatprep.subr.bf16.mxu0 0
  %154 = vmatpush1.bf16.msra.mxu0 0
  %155 = vmatprep.subr.bf16.mxu0 0
  %156 = vmatpush1.bf16.msra.mxu0 0
  %157 = vmatprep.mubr.bf16.mxu0 0
  %158 = vmatmul.mubr.bf16.gmra.mrb[0].mxu0 %v102
  %v159 = vpop.f32.mrb[0].mxu0
  %v160 = vadd.f32 0.0, %v159
  %v161 = vpop.f32.mrb[0].mxu0
  %v162 = vpop.f32.mrb[0].mxu0
  %v163 = vadd.f32 0.0, %v162
  %v164 = vpop.f32.mrb[0].mxu0
  %165 = vmatprep.mubr.bf16.mxu0 0
  %166 = vmatmul.mubr.bf16.gmra.mrb[0].mxu0 %v105
  %v167 = vpop.f32.mrb[0].mxu0
  %v168 = vadd.f32 0.0, %v167
  %v169 = vpop.f32.mrb[0].mxu0
  %v170 = vpop.f32.mrb[0].mxu0
  %v171 = vadd.f32 0.0, %v170
  %v172 = vpop.f32.mrb[0].mxu0
  %173 = vmatprep.mubr.bf16.mxu0 0
  %174 = vmatmul.mubr.bf16.gmra.mrb[0].mxu0 %v108
  %v175 = vpop.f32.mrb[0].mxu0
  %v176 = vadd.f32 0.0, %v175
  %v177 = vpop.f32.mrb[0].mxu0
  %v178 = vpop.f32.mrb[0].mxu0
  %v179 = vadd.f32 0.0, %v178
  %v180 = vpop.f32.mrb[0].mxu0
  %181 = vmatprep.mubr.bf16.mxu0 0
  %182 = vmatmul.mubr.bf16.gmra.mrb[0].mxu0 %v111
  %v183 = vpop.f32.mrb[0].mxu0
  %v184 = vadd.f32 0.0, %v183
  %v185 = vpop.f32.mrb[0].mxu0
  %v186 = vpop.f32.mrb[0].mxu0
  %v187 = vadd.f32 0.0, %v186
  %v188 = vpop.f32.mrb[0].mxu0
  %189 = vmatprep.mubr.bf16.mxu0 0
  %190 = vmatmul.mubr.bf16.gmra.mrb[0].mxu0 %v114
  %v191 = vpop.f32.mrb[0].mxu0
  %v192 = vadd.f32 0.0, %v191
  %v193 = vpop.f32.mrb[0].mxu0
  %v194 = vpop.f32.mrb[0].mxu0
  %v195 = vadd.f32 0.0, %v194
  %v196 = vpop.f32.mrb[0].mxu0
  %197 = vmatprep.mubr.bf16.mxu0 0
  %198 = vmatmul.mubr.bf16.gmra.mrb[0].mxu0 %v117
  %v199 = vpop.f32.mrb[0].mxu0
  %v200 = vadd.f32 0.0, %v199
  %v201 = vpop.f32.mrb[0].mxu0
  %v202 = vpop.f32.mrb[0].mxu0
  %v203 = vadd.f32 0.0, %v202
  %v204 = vpop.f32.mrb[0].mxu0
  %205 = vmatprep.mubr.bf16.mxu0 0
  %206 = vmatmul.mubr.bf16.gmra.mrb[0].mxu0 %v120
  %v207 = vpop.f32.mrb[0].mxu0
  %v208 = vadd.f32 0.0, %v207
  %v209 = vpop.f32.mrb[0].mxu0
  %v210 = vpop.f32.mrb[0].mxu0
  %v211 = vadd.f32 0.0, %v210
  %v212 = vpop.f32.mrb[0].mxu0
  %213 = vmatprep.mubr.bf16.mxu0 0
  %214 = vmatmul.mubr.bf16.gmra.mrb[0].mxu0 %v123
  %v215 = vpop.f32.mrb[0].mxu0
  %v216 = vadd.f32 0.0, %v215
  %v217 = vpop.f32.mrb[0].mxu0
  %v218 = vpop.f32.mrb[0].mxu0
  %v219 = vadd.f32 0.0, %v218
  %v220 = vpop.f32.mrb[0].mxu0
  %221 = vdwg.mxu0
  %v222 = vpack.c.bf16 %v163, %v160
  %v223 = vpack.c.bf16 %v171, %v168
  %v224 = vpack.c.bf16 %v179, %v176
  %v225 = vpack.c.bf16 %v187, %v184
  %v226 = vpack.c.bf16 %v195, %v192
  %v227 = vpack.c.bf16 %v203, %v200
  %v228 = vpack.c.bf16 %v211, %v208
  %v229 = vpack.c.bf16 %v219, %v216
  %v238 = vunpack.c.l.b16 %v222
  %v239 = vunpack.c.h.b16 %v222
  %v240 = vunpack.c.l.b16 %v223
  %v241 = vunpack.c.h.b16 %v223
  %v242 = vunpack.c.l.b16 %v224
  %v243 = vunpack.c.h.b16 %v224
  %v244 = vunpack.c.l.b16 %v225
  %v245 = vunpack.c.h.b16 %v225
  %v246 = vunpack.c.l.b16 %v226
  %v247 = vunpack.c.h.b16 %v226
  %v248 = vunpack.c.l.b16 %v227
  %v249 = vunpack.c.h.b16 %v227
  %v250 = vunpack.c.l.b16 %v228
  %v251 = vunpack.c.h.b16 %v228
  %v252 = vunpack.c.l.b16 %v229
  %v253 = vunpack.c.h.b16 %v229
  %v254 = vpack.c.b16 %v238, %v238
  %v255 = vpack.c.b16 %v239, %v239
  %v256 = vpack.c.b16 %v240, %v240
  %v257 = vpack.c.b16 %v241, %v241
  %v258 = vpack.c.b16 %v242, %v242
  %v259 = vpack.c.b16 %v243, %v243
  %v260 = vpack.c.b16 %v244, %v244
  %v261 = vpack.c.b16 %v245, %v245
  %v262 = vpack.c.b16 %v246, %v246
  %v263 = vpack.c.b16 %v247, %v247
  %v264 = vpack.c.b16 %v248, %v248
  %v265 = vpack.c.b16 %v249, %v249
  %v266 = vpack.c.b16 %v250, %v250
  %v267 = vpack.c.b16 %v251, %v251
  %v268 = vpack.c.b16 %v252, %v252
  %v269 = vpack.c.b16 %v253, %v253
  %vm286 = vcmask 257024
  %287 = vst.msk [vmem:[%s2] sm:$0xf] %vm286, %v254
  %288 = vst.msk [vmem:[%s2 + $0x4] sm:$0xf] %vm286, %v255
  %289 = vst.msk [vmem:[%s2 + $0x8] sm:$0xf] %vm286, %v256
  %290 = vst.msk [vmem:[%s2 + $0xc] sm:$0xf] %vm286, %v257
  %291 = vst.msk [vmem:[%s2 + $0x10] sm:$0xf] %vm286, %v258
  %292 = vst.msk [vmem:[%s2 + $0x14] sm:$0xf] %vm286, %v259
  %293 = vst.msk [vmem:[%s2 + $0x18] sm:$0xf] %vm286, %v260
  %294 = vst.msk [vmem:[%s2 + $0x1c] sm:$0xf] %vm286, %v261
  %295 = vst.msk [vmem:[%s2 + $0x20] sm:$0xf] %vm286, %v262
  %296 = vst.msk [vmem:[%s2 + $0x24] sm:$0xf] %vm286, %v263
  %297 = vst.msk [vmem:[%s2 + $0x28] sm:$0xf] %vm286, %v264
  %298 = vst.msk [vmem:[%s2 + $0x2c] sm:$0xf] %vm286, %v265
  %299 = vst.msk [vmem:[%s2 + $0x30] sm:$0xf] %vm286, %v266
  %300 = vst.msk [vmem:[%s2 + $0x34] sm:$0xf] %vm286, %v267
  %301 = vst.msk [vmem:[%s2 + $0x38] sm:$0xf] %vm286, %v268
  %302 = vst.msk [vmem:[%s2 + $0x3c] sm:$0xf] %vm286, %v269
  // Predicated region
  $region10: #{tpu_custom_call.1} parent=0 // pred_check
    _
  $region11: #{tpu_custom_call.1} parent=0 // pred_check_branch
    %304 = sbr.rel (0) target = $region13
  $region12: #{tpu_custom_call.1} parent=0 // pred_region
    _
  $region13: #{tpu_custom_call.1} parent=0 // pred_fallthru
    _
  // Predicated region
  $region14: #{tpu_custom_call.1} parent=0 // pred_check
    _
  $region15: #{tpu_custom_call.1} parent=0 // pred_check_branch
    %306 = sbr.rel (0) target = $region17
  $region16: #{tpu_custom_call.1} parent=0 // pred_region
    _
  $region17: #{tpu_custom_call.1} parent=0 // pred_fallthru
    _

</llo_original>
